<compile_context>
chip_gen: v5e
topology: v5e:2x2
jax: 0.10.0
libtpu: 0.0.40
codegen_flags: <defaults>
</compile_context>

<pallas_src>
import functools
import math

import jax
import jax.numpy as jnp
from jax.experimental import pallas as pl
from jax.experimental.pallas import tpu as pltpu


def _pick_tile(dim, align, cap):
    """Largest divisor of `dim` that is <= cap and (multiple of `align` or == dim)."""
    if dim <= cap:
        return dim
    for d in range(cap, 0, -1):
        if dim % d == 0 and d % align == 0:
            return d
    return dim  # no aligned divisor fits the cap -> fall back to the full dim


def _spatial_attention_kernel(w_ref, x_ref, o_ref, sum_ref, max_ref, *,
                              inv_channels):
    # w_ref:   SMEM (2, 3) f32   -- conv weights [in_channel(avg,max), tap]
    # x_ref:   VMEM (TN, TC, L)  -- native dtype block of the input
    # o_ref:   VMEM (TN, L)      -- squeezed output block
    # sum_ref: VMEM (TN, L) f32  -- running channel sum (for mean)
    # max_ref: VMEM (TN, L) f32  -- running channel max
    c = pl.program_id(1)

    @pl.when(c == 0)
    def _():
        sum_ref[...] = jnp.zeros_like(sum_ref)
        max_ref[...] = jnp.full_like(max_ref, -jnp.inf)

    x = x_ref[...].astype(jnp.float32)                  # upcast in-kernel
    sum_ref[...] = sum_ref[...] + jnp.sum(x, axis=1)    # (TN, L)
    max_ref[...] = jnp.maximum(max_ref[...], jnp.max(x, axis=1))

    @pl.when(c == pl.num_programs(1) - 1)
    def _():
        avg = sum_ref[...] * inv_channels               # mean over the TRUE C
        mx = max_ref[...]
        tn, L = avg.shape

        # Hoisted scalar weight reads (PyTorch weight[0, in_channel, tap]).
        w_a0 = w_ref[0, 0]
        w_a1 = w_ref[0, 1]
        w_a2 = w_ref[0, 2]
        w_m0 = w_ref[1, 0]
        w_m1 = w_ref[1, 1]
        w_m2 = w_ref[1, 2]

        # Zero-padded rows; cross-correlation with padding=1:
        #   out[l] = sum_j w[:, j] * in[l + j - 1]
        zero = jnp.zeros((tn, 1), dtype=jnp.float32)
        avg_p = jnp.concatenate([zero, avg, zero], axis=1)   # (TN, L+2)
        mx_p = jnp.concatenate([zero, mx, zero], axis=1)     # (TN, L+2)

        acc = (w_a0 * avg_p[:, 0:L] + w_m0 * mx_p[:, 0:L]
               + w_a1 * avg_p[:, 1:L + 1] + w_m1 * mx_p[:, 1:L + 1]
               + w_a2 * avg_p[:, 2:L + 2] + w_m2 * mx_p[:, 2:L + 2])

        o_ref[...] = jax.nn.sigmoid(acc).astype(o_ref.dtype)


def spatial_attention(x, weight, *, target_block_bytes=4 * 1024 * 1024):
    """x: (N, C, L) any float dtype, weight: (1, 2, 3) -> (N, 1, L) in x.dtype."""
    N, C, L = x.shape
    out_dtype = x.dtype
    w2d = jnp.asarray(weight, jnp.float32).reshape(2, 3)

    itemsize_in = jnp.dtype(x.dtype).itemsize
    itemsize_out = jnp.dtype(out_dtype).itemsize

    # Batch rows per block.  Output block is (TN, L) so TN must be a multiple
    # of 8 or the full batch (sublane rule).
    tn = _pick_tile(N, 8, 8)
    # Channel tile (reduction axis).  Input block trailing dims are (TC, L):
    # TC must be a multiple of 8 or the full C.  Budget one input buffer at
    # ~target_block_bytes so double-buffering stays well inside VMEM (v7x-safe).
    budget_elems = max(1, target_block_bytes // max(1, tn * L * itemsize_in))
    tc = _pick_tile(C, 8, budget_elems)

    grid = (N // tn, C // tc)

    # Derive an explicit VMEM limit from the chosen tiles (with headroom).
    block_in = tn * tc * L * itemsize_in
    block_out = tn * L * itemsize_out
    scratch_bytes = 2 * tn * L * 4
    needed = 2 * block_in + 2 * block_out + scratch_bytes
    vmem_limit = int(min(48 * 1024 * 1024,
                         max(4 * needed, 16 * 1024 * 1024)))

    kernel = functools.partial(_spatial_attention_kernel,
                               inv_channels=1.0 / C)

    out2d = pl.pallas_call(
        kernel,
        out_shape=jax.ShapeDtypeStruct((N, L), out_dtype),
        grid_spec=pltpu.PrefetchScalarGridSpec(
            num_scalar_prefetch=0,
            grid=grid,
            in_specs=[
                pl.BlockSpec((2, 3), lambda n, c: (0, 0),
                             memory_space=pltpu.SMEM),
                pl.BlockSpec((tn, tc, L), lambda n, c: (n, c, 0)),
            ],
            out_specs=pl.BlockSpec((tn, L), lambda n, c: (n, 0)),
            scratch_shapes=[
                pltpu.VMEM((tn, L), jnp.float32),   # running channel sum
                pltpu.VMEM((tn, L), jnp.float32),   # running channel max
            ],
        ),
        compiler_params=pltpu.CompilerParams(
            dimension_semantics=("parallel", "arbitrary"),
            vmem_limit_bytes=vmem_limit,
        ),
    )(w2d, x)

    # Restore the PyTorch (N, 1, L) shape (metadata-only reshape).
    return out2d[:, None, :]


if __name__ == "__main__":
    key = jax.random.PRNGKey(0)
    k_x, k_w = jax.random.split(key)

    N, C, L = 2, 4, 16
    x = jax.random.normal(k_x, (N, C, L), dtype=jnp.float32)

    # Deterministic Conv1d(2, 1, kernel_size=3, bias=False) weight init,
    # PyTorch-default-style uniform(-1/sqrt(fan_in), 1/sqrt(fan_in)), fan_in=6.
    bound = 1.0 / math.sqrt(2.0 * 3.0)
    weight = jax.random.uniform(k_w, (1, 2, 3), dtype=jnp.float32,
                                minval=-bound, maxval=bound)

    out = spatial_attention(x, weight)
    jax.block_until_ready(out)

    # Pure-JAX reference (same math, lax conv).
    avg = jnp.mean(x, axis=1, keepdims=True)
    mx = jnp.max(x, axis=1, keepdims=True)
    cat = jnp.concatenate([avg, mx], axis=1)                 # (N, 2, L)
    ref = jax.lax.conv_general_dilated(
        cat, weight, window_strides=(1,), padding=((1, 1),),
        dimension_numbers=("NCH", "OIH", "NCH"))
    ref = jax.nn.sigmoid(ref)

    assert out.shape == (N, 1, L)
    assert jnp.allclose(out, ref, atol=1e-5, rtol=1e-5)
    print("KERNEL_OK")
</pallas_src>

<mosaic_0001>
module attributes {stable_mosaic.version = 11 : i64} {
  func.func @_spatial_attention_kernel(%arg0: i32, %arg1: i32, %arg2: memref<2x3xf32, #tpu.memory_space<smem>>, %arg3: memref<2x4x16xf32, #tpu.memory_space<vmem>>, %arg4: memref<2x16xf32, #tpu.memory_space<vmem>>, %arg5: memref<2x16xf32, #tpu.memory_space<vmem>>, %arg6: memref<2x16xf32, #tpu.memory_space<vmem>>) attributes {dimension_semantics = [#tpu.dimension_semantics<parallel>, #tpu.dimension_semantics<arbitrary>], iteration_bounds = array<i64: 1, 1>, scalar_prefetch = 0 : i64, scratch_operands = 2 : i64, tpu.core_type = #tpu.core_type<tc>, window_params = [{transform_indices = @transform_0, window_bounds = array<i64: 2, 3>}, {transform_indices = @transform_1, window_bounds = array<i64: 2, 4, 16>}, {transform_indices = @transform_2, window_bounds = array<i64: 2, 16>}]} {
    %c0_i32 = arith.constant 0 : i32
    %0 = arith.cmpi eq, %arg1, %c0_i32 : i32
    %1 = arith.extui %0 : i1 to i32
    %c0_i32_0 = arith.constant 0 : i32
    %2 = arith.cmpi ne, %1, %c0_i32_0 : i32
    scf.if %2 {
      %cst_14 = arith.constant 0.000000e+00 : f32
      %15 = vector.broadcast %cst_14 : f32 to vector<2x16xf32>
      %c0_15 = arith.constant 0 : index
      %c0_16 = arith.constant 0 : index
      %16 = vector.load %arg5[%c0_15, %c0_16] : memref<2x16xf32, #tpu.memory_space<vmem>>, vector<2x16xf32>
      tpu.vector_store %arg5[%c0_15, %c0_16], %15 {strides = array<i32>} : memref<2x16xf32, #tpu.memory_space<vmem>>, vector<2x16xf32>,
      %cst_17 = arith.constant 0xFF800000 : f32
      %17 = vector.broadcast %cst_17 : f32 to vector<2x16xf32>
      %c0_18 = arith.constant 0 : index
      %c0_19 = arith.constant 0 : index
      %18 = vector.load %arg6[%c0_18, %c0_19] : memref<2x16xf32, #tpu.memory_space<vmem>>, vector<2x16xf32>
      tpu.vector_store %arg6[%c0_18, %c0_19], %17 {strides = array<i32>} : memref<2x16xf32, #tpu.memory_space<vmem>>, vector<2x16xf32>,
    } else {
    }
    %c0 = arith.constant 0 : index
    %c0_1 = arith.constant 0 : index
    %c0_2 = arith.constant 0 : index
    %3 = vector.load %arg3[%c0, %c0_1, %c0_2] : memref<2x4x16xf32, #tpu.memory_space<vmem>>, vector<2x4x16xf32>
    %c0_3 = arith.constant 0 : index
    %c0_4 = arith.constant 0 : index
    %4 = vector.load %arg5[%c0_3, %c0_4] : memref<2x16xf32, #tpu.memory_space<vmem>>, vector<2x16xf32>
    %cst = arith.constant dense<0.000000e+00> : vector<2x16xf32>
    %5 = vector.multi_reduction <add>, %3, %cst [1] : vector<2x4x16xf32> to vector<2x16xf32>
    %6 = arith.addf %4, %5 : vector<2x16xf32>
    %c0_5 = arith.constant 0 : index
    %c0_6 = arith.constant 0 : index
    %7 = vector.load %arg5[%c0_5, %c0_6] : memref<2x16xf32, #tpu.memory_space<vmem>>, vector<2x16xf32>
    tpu.vector_store %arg5[%c0_5, %c0_6], %6 {strides = array<i32>} : memref<2x16xf32, #tpu.memory_space<vmem>>, vector<2x16xf32>,
    %c0_7 = arith.constant 0 : index
    %c0_8 = arith.constant 0 : index
    %8 = vector.load %arg6[%c0_7, %c0_8] : memref<2x16xf32, #tpu.memory_space<vmem>>, vector<2x16xf32>
    %cst_9 = arith.constant dense<0xFF800000> : vector<2x16xf32>
    %9 = vector.multi_reduction <maximumf>, %3, %cst_9 [1] : vector<2x4x16xf32> to vector<2x16xf32>
    %10 = arith.maximumf %8, %9 : vector<2x16xf32>
    %c0_10 = arith.constant 0 : index
    %c0_11 = arith.constant 0 : index
    %11 = vector.load %arg6[%c0_10, %c0_11] : memref<2x16xf32, #tpu.memory_space<vmem>>, vector<2x16xf32>
    tpu.vector_store %arg6[%c0_10, %c0_11], %10 {strides = array<i32>} : memref<2x16xf32, #tpu.memory_space<vmem>>, vector<2x16xf32>,
    %c0_i32_12 = arith.constant 0 : i32
    %12 = arith.cmpi eq, %arg1, %c0_i32_12 : i32
    %13 = arith.extui %12 : i1 to i32
    %c0_i32_13 = arith.constant 0 : i32
    %14 = arith.cmpi ne, %13, %c0_i32_13 : i32
    scf.if %14 {
      %c0_14 = arith.constant 0 : index
      %c0_15 = arith.constant 0 : index
      %15 = vector.load %arg5[%c0_14, %c0_15] : memref<2x16xf32, #tpu.memory_space<vmem>>, vector<2x16xf32>
      %cst_16 = arith.constant 2.500000e-01 : f32
      %16 = vector.broadcast %cst_16 : f32 to vector<2x16xf32>
      %17 = arith.mulf %15, %16 : vector<2x16xf32>
      %c0_17 = arith.constant 0 : index
      %c0_18 = arith.constant 0 : index
      %18 = vector.load %arg6[%c0_17, %c0_18] : memref<2x16xf32, #tpu.memory_space<vmem>>, vector<2x16xf32>
      %c0_19 = arith.constant 0 : index
      %c0_20 = arith.constant 0 : index
      %19 = memref.load %arg2[%c0_19, %c0_20] : memref<2x3xf32, #tpu.memory_space<smem>>
      %c0_21 = arith.constant 0 : index
      %c1 = arith.constant 1 : index
      %20 = memref.load %arg2[%c0_21, %c1] : memref<2x3xf32, #tpu.memory_space<smem>>
      %c0_22 = arith.constant 0 : index
      %c2 = arith.constant 2 : index
      %21 = memref.load %arg2[%c0_22, %c2] : memref<2x3xf32, #tpu.memory_space<smem>>
      %c1_23 = arith.constant 1 : index
      %c0_24 = arith.constant 0 : index
      %22 = memref.load %arg2[%c1_23, %c0_24] : memref<2x3xf32, #tpu.memory_space<smem>>
      %c1_25 = arith.constant 1 : index
      %c1_26 = arith.constant 1 : index
      %23 = memref.load %arg2[%c1_25, %c1_26] : memref<2x3xf32, #tpu.memory_space<smem>>
      %c1_27 = arith.constant 1 : index
      %c2_28 = arith.constant 2 : index
      %24 = memref.load %arg2[%c1_27, %c2_28] : memref<2x3xf32, #tpu.memory_space<smem>>
      %cst_29 = arith.constant 0.000000e+00 : f32
      %25 = vector.broadcast %cst_29 : f32 to vector<2x1xf32>
      %26 = tpu.concatenate %25, %17, %25 in 1 : vector<2x1xf32>, vector<2x16xf32>, vector<2x1xf32> -> vector<2x18xf32>
      %27 = tpu.concatenate %25, %18, %25 in 1 : vector<2x1xf32>, vector<2x16xf32>, vector<2x1xf32> -> vector<2x18xf32>
      %28 = vector.extract_strided_slice %26 {offsets = [0, 0], sizes = [2, 16], strides = [1, 1]} : vector<2x18xf32> to vector<2x16xf32>
      %29 = vector.broadcast %19 : f32 to vector<2x16xf32>
      %30 = arith.mulf %29, %28 : vector<2x16xf32>
      %31 = vector.extract_strided_slice %27 {offsets = [0, 0], sizes = [2, 16], strides = [1, 1]} : vector<2x18xf32> to vector<2x16xf32>
      %32 = vector.broadcast %22 : f32 to vector<2x16xf32>
      %33 = arith.mulf %32, %31 : vector<2x16xf32>
      %34 = arith.addf %30, %33 : vector<2x16xf32>
      %35 = vector.extract_strided_slice %26 {offsets = [0, 1], sizes = [2, 16], strides = [1, 1]} : vector<2x18xf32> to vector<2x16xf32>
      %36 = vector.broadcast %20 : f32 to vector<2x16xf32>
      %37 = arith.mulf %36, %35 : vector<2x16xf32>
      %38 = arith.addf %34, %37 : vector<2x16xf32>
      %39 = vector.extract_strided_slice %27 {offsets = [0, 1], sizes = [2, 16], strides = [1, 1]} : vector<2x18xf32> to vector<2x16xf32>
      %40 = vector.broadcast %23 : f32 to vector<2x16xf32>
      %41 = arith.mulf %40, %39 : vector<2x16xf32>
      %42 = arith.addf %38, %41 : vector<2x16xf32>
      %43 = vector.extract_strided_slice %26 {offsets = [0, 2], sizes = [2, 16], strides = [1, 1]} : vector<2x18xf32> to vector<2x16xf32>
      %44 = vector.broadcast %21 : f32 to vector<2x16xf32>
      %45 = arith.mulf %44, %43 : vector<2x16xf32>
      %46 = arith.addf %42, %45 : vector<2x16xf32>
      %47 = vector.extract_strided_slice %27 {offsets = [0, 2], sizes = [2, 16], strides = [1, 1]} : vector<2x18xf32> to vector<2x16xf32>
      %48 = vector.broadcast %24 : f32 to vector<2x16xf32>
      %49 = arith.mulf %48, %47 : vector<2x16xf32>
      %50 = arith.addf %46, %49 : vector<2x16xf32>
      %51 = arith.negf %50 : vector<2x16xf32>
      %52 = math.exp %51 : vector<2x16xf32>
      %cst_30 = arith.constant 1.000000e+00 : f32
      %53 = vector.broadcast %cst_30 : f32 to vector<2x16xf32>
      %54 = arith.addf %53, %52 : vector<2x16xf32>
      %55 = arith.divf %53, %54 : vector<2x16xf32>
      %c0_31 = arith.constant 0 : index
      %c0_32 = arith.constant 0 : index
      %56 = vector.load %arg4[%c0_31, %c0_32] : memref<2x16xf32, #tpu.memory_space<vmem>>, vector<2x16xf32>
      tpu.vector_store %arg4[%c0_31, %c0_32], %55 {strides = array<i32>} : memref<2x16xf32, #tpu.memory_space<vmem>>, vector<2x16xf32>,
    } else {
    }
    return
  }
  func.func @transform_0(%arg0: i32, %arg1: i32) -> (i32, i32) {
    %c0_i32 = arith.constant 0 : i32
    %c0_i32_0 = arith.constant 0 : i32
    %c0_i32_1 = arith.constant 0 : i32
    return %c0_i32, %c0_i32_0 : i32, i32
  }
  func.func @transform_1(%arg0: i32, %arg1: i32) -> (i32, i32, i32) {
    %c0_i32 = arith.constant 0 : i32
    %c0_i32_0 = arith.constant 0 : i32
    return %arg0, %arg1, %c0_i32 : i32, i32, i32
  }
  func.func @transform_2(%arg0: i32, %arg1: i32) -> (i32, i32) {
    %c0_i32 = arith.constant 0 : i32
    %c0_i32_0 = arith.constant 0 : i32
    return %arg0, %c0_i32 : i32, i32
  }
}

</mosaic_0001>

<llo_original>
// kernel: tpu_custom_call.1
$region0: #{tpu_custom_call.1}
  #allocation0 [shape = 'u32[]', space=smem, size = 0x4, offset = 0x4, fixed_abs, tag = 'smem constant byte address 0x4 - core index']
  #allocation1 [shape = 'u32[72,128]{1,0:T(1,128)}', space=vmem, size = 0x9000, scoped, tag = 'internal scratch']
  #allocation2 [shape = 'f32[2,16]{1,0:T(2,128)}', space=vmem, size = 0x400, scoped, tag = 'scratch operand']
  #allocation3 [shape = 'f32[2,16]{1,0:T(2,128)}', space=vmem, size = 0x400, scoped, tag = 'scratch operand']
  %s0 = inlined_call_operand.hbm [shape: f32[2,3], index: 0, kind: input, shape index: {}]
  %s1 = inlined_call_operand.hbm [shape: f32[2,4,16], index: 1, kind: input, shape index: {}]
  %s2 = inlined_call_operand.hbm [shape: f32[2,16], index: 2, kind: output, shape index: {}]
  %s3 = sld [smem:[#allocation0]]
  $region34: #{tpu_custom_call.1} parent=0
    _
  %s5 = ssub.s32 1, %s3
  %s6 = scalar_select 0, %s5, %s3
  $region1: #{tpu_custom_call.1} parent=0
    #allocation4 [shape = 'u8[1024]{0}', space=smem, size = 0x400, scoped, tag = 'input window, operand 0, single buffered']
    #allocation5 [shape = 's32[1]{0}', space=sflag, size = 0x4, scoped, tag = 'scoped memory for tpu_custom_call.1']
    #allocation6 [shape = 's32[1]{0}', space=sflag, size = 0x4, scoped, tag = 'scoped memory for tpu_custom_call.1']
    #allocation7 [shape = 's32[1]{0}', space=sflag, size = 0x4, scoped, tag = 'scoped memory for tpu_custom_call.1']
    #allocation8 [shape = 'u8[4096]{0}', space=vmem, size = 0x1000, scoped, tag = 'input window, operand 1, single buffered']
    #allocation9 [shape = 'u8[1024]{0}', space=vmem, size = 0x400, scoped, tag = 'output window, operand 0, single buffered']
    %7 = vsyncpa [#allocation7], 0
    %8 = vsyncpa [#allocation5], 0
    %9 = vsyncpa [#allocation6], 0
    // Predicated region
    $region2: #{tpu_custom_call.1} parent=1 // pred_check
      _
    $region3: #{tpu_custom_call.1} parent=1 // pred_check_branch
      %11 = sbr.rel (0) target = $region5
    $region4: #{tpu_custom_call.1} parent=1 // pred_region
      %13 = vsyncadd [#allocation7], 0
      %s15 = sshll.u32 %s0, 4
      %s16 = int_to_ptr.hbm [resolvable:$true] %s15
      %18 = dma.hbm_to_smem %s16, 32, [#allocation4], [#allocation7]
    $region5: #{tpu_custom_call.1} parent=1 // pred_fallthru
      _
    // Predicated region
    $region6: #{tpu_custom_call.1} parent=1 // pred_check
      _
    $region7: #{tpu_custom_call.1} parent=1 // pred_check_branch
      %20 = sbr.rel (0) target = $region9
    $region8: #{tpu_custom_call.1} parent=1 // pred_region
      %22 = vsyncadd [#allocation5], 0
      %s23 = sshll.u32 %s1, 4
      %s24 = int_to_ptr.hbm [resolvable:$true] %s23
      %s25 = sshll.u32 [#allocation8], 4
      %s26 = int_to_ptr.vmem [resolvable:$true] %s25
      %31 = dma.hbm_to_vmem [thread:$0]  %s24, 128, %s26, [#allocation5], 64, 64, 4
    $region9: #{tpu_custom_call.1} parent=1 // pred_fallthru
      _
    // Predicated region
    $region10: #{tpu_custom_call.1} parent=1 // pred_check
      _
    $region11: #{tpu_custom_call.1} parent=1 // pred_check_branch
      %33 = sbr.rel (0) target = $region13
    $region12: #{tpu_custom_call.1} parent=1 // pred_region
      %35 = dma.done [#allocation7], 32
    $region13: #{tpu_custom_call.1} parent=1 // pred_fallthru
      _
    // Predicated region
    $region14: #{tpu_custom_call.1} parent=1 // pred_check
      _
    $region15: #{tpu_custom_call.1} parent=1 // pred_check_branch
      %37 = sbr.rel (0) target = $region17
    $region16: #{tpu_custom_call.1} parent=1 // pred_region
      %39 = dma.done [#allocation5], 128
    $region17: #{tpu_custom_call.1} parent=1 // pred_fallthru
      _
    %40 = sfence
    %p41 = scmp.eq.s32.totalorder 0, 0
    // Predicated region
    $region18: #{tpu_custom_call.1} parent=1 // pred_check
      %p42 = pneg %p41
    $region19: #{tpu_custom_call.1} parent=1 // pred_check_branch
      %44 = sbr.rel (%p42) target = $region21
    $region20: #{tpu_custom_call.1} parent=1 // pred_region
      %vm45 = vcmask 123904
      %46 = vst.msk [vmem:[#allocation2] sm:$0x3] %vm45, 0.0
      %47 = vst.msk [vmem:[#allocation3] sm:$0x3] %vm45, -inf
    $region21: #{tpu_custom_call.1} parent=1 // pred_fallthru
      _
    %v48 = vld [vmem:[#allocation8] sm:$0xf]
    %v49 = vld [vmem:[#allocation8 + $0x4] sm:$0xf]
    %v50 = vld [vmem:[#allocation2] sm:$0x3]
    %vm51 = vcmask 125952
    %v52 = vsel %vm51, %v48, 0.0
    %v53 = vrot.slane %v52, 4
    %v54 = vadd.f32 %v52, %v53
    %v55 = vrot.slane %v54, 2
    %v56 = vadd.f32 %v54, %v55
    %v57 = vrot.slane %v56, 1
    %v58 = vadd.f32 %v56, %v57
    %v59 = vsel %vm51, %v49, 0.0
    %v60 = vrot.slane %v59, 4
    %v61 = vadd.f32 %v59, %v60
    %v62 = vrot.slane %v61, 2
    %v63 = vadd.f32 %v61, %v62
    %v64 = vrot.slane %v63, 1
    %v65 = vadd.f32 %v63, %v64
    %vm68 = vcmask 1041409
    %v69 = vsel %vm68, %v65, %v58
    %v71 = vadd.f32 %v50, %v69
    %vm72 = vcmask 123904
    %73 = vst.msk [vmem:[#allocation2] sm:$0x3] %vm72, %v71
    %v74 = vld [vmem:[#allocation3] sm:$0x3]
    %v75 = vsel %vm51, %v48, -inf
    %v76 = vrot.slane %v75, 4
    %v77 = vmax.f32 %v75, %v76
    %v78 = vrot.slane %v77, 2
    %v79 = vmax.f32 %v77, %v78
    %v80 = vrot.slane %v79, 1
    %v81 = vmax.f32 %v79, %v80
    %v82 = vsel %vm51, %v49, -inf
    %v83 = vrot.slane %v82, 4
    %v84 = vmax.f32 %v82, %v83
    %v85 = vrot.slane %v84, 2
    %v86 = vmax.f32 %v84, %v85
    %v87 = vrot.slane %v86, 1
    %v88 = vmax.f32 %v86, %v87
    %v91 = vsel %vm68, %v88, %v81
    %v93 = vmax.f32 %v74, %v91
    %94 = vst.msk [vmem:[#allocation3] sm:$0x3] %vm72, %v93
    // Predicated region
    $region22: #{tpu_custom_call.1} parent=1 // pred_check
      %p95 = pneg %p41
    $region23: #{tpu_custom_call.1} parent=1 // pred_check_branch
      %97 = sbr.rel (%p95) target = $region25
    $region24: #{tpu_custom_call.1} parent=1 // pred_region
      %v98 = vld [vmem:[#allocation2] sm:$0x3]
      %v99 = vmul.f32 %v98, 0.25
      %v100 = vld [vmem:[#allocation3] sm:$0x3]
      %s101 = sld [smem:[#allocation4]]
      %s102 = sld [smem:[#allocation4 + $0x1]]
      %s103 = sld [smem:[#allocation4 + $0x2]]
      %s104 = sld [smem:[#allocation4 + $0x80]]
      %s105 = sld [smem:[#allocation4 + $0x81]]
      %s106 = sld [smem:[#allocation4 + $0x82]]
      %108 = vrot.lane.b32.xlu0 %v99, 1
      %v109 = vpop.permute.xlu0 %108
      %vm111 = vcmask 7168
      %v112 = vsel %vm111, 0.0, %v109
      %vm113 = vcmask 138240
      %v114 = vsel %vm113, %v112, 0.0
      %116 = vrot.lane.b32.xlu0 %v100, 1
      %v117 = vpop.permute.xlu0 %116
      %v119 = vsel %vm111, 0.0, %v117
      %v120 = vsel %vm113, %v119, 0.0
      %v121 = vstv %s101
      %v122 = vmul.f32 %v121, %v114
      %v123 = vstv %s104
      %v124 = vmul.f32 %v123, %v120
      %v125 = vadd.f32 %v122, %v124
      %v126 = vstv %s102
      %v127 = vmul.f32 %v126, %v114
      %129 = vrot.lane.b32.xlu0 %v127, 127
      %v130 = vpop.permute.xlu0 %129
      %v132 = vadd.f32 %v125, %v130
      %v133 = vstv %s105
      %v134 = vmul.f32 %v133, %v120
      %136 = vrot.lane.b32.xlu0 %v134, 127
      %v137 = vpop.permute.xlu0 %136
      %v139 = vadd.f32 %v132, %v137
      %v140 = vstv %s103
      %v141 = vmul.f32 %v140, %v114
      %143 = vrot.lane.b32.xlu0 %v141, 126
      %v144 = vpop.permute.xlu0 %143
      %v146 = vadd.f32 %v139, %v144
      %v147 = vstv %s106
      %v148 = vmul.f32 %v147, %v120
      %150 = vrot.lane.b32.xlu0 %v148, 126
      %v151 = vpop.permute.xlu0 %150
      %v153 = vadd.f32 %v146, %v151
      %v154 = vxor.u32 %v153, 2147483648
      %v155 = vmul.f32 %v154, 1.442695
      %v156 = vpow.pop %v155
      %v157 = vadd.f32 %v156, 1.0
      %v158 = vrcp.pop %v157
      %v159 = vmul.f32 %v157, %v158
      %v160 = vsub.f32 1.0, %v159
      %v161 = vmul.f32 %v158, %v160
      %v162 = vadd.f32 %v158, %v161
      %vm163 = vweird.f32 %v157
      %vm164 = vweird.f32 %v158
      %vm165 = vmor %vm163, %vm164
      %v166 = vsel %vm165, %v158, %v162
      %v167 = vand.u32 2147483647, %v157
      %vm168 = vcmp.eq.f32.partialorder %v167, 8.507059e+37
      %v169 = vand.u32 %v157, 2147483648
      %v170 = vor.u32 1.1754944e-38, %v169
      %v171 = vsel %vm168, %v170, %v166
      %v172 = vmul.f32 1.0, %v171
      %173 = vst.msk [vmem:[#allocation9] sm:$0x3] %vm72, %v172
    $region25: #{tpu_custom_call.1} parent=1 // pred_fallthru
      _
    // Predicated region
    $region26: #{tpu_custom_call.1} parent=1 // pred_check
      _
    $region27: #{tpu_custom_call.1} parent=1 // pred_check_branch
      %175 = sbr.rel (0) target = $region29
    $region28: #{tpu_custom_call.1} parent=1 // pred_region
      %177 = vsyncadd [#allocation6], 0
      %s179 = sshll.u32 [#allocation9], 4
      %s180 = int_to_ptr.vmem [resolvable:$true] %s179
      %s181 = sshll.u32 %s2, 4
      %s182 = int_to_ptr.hbm [resolvable:$true] %s181
      %184 = dma.vmem_to_hbm [thread:$0]  %s180, 32, %s182, [#allocation6]
    $region29: #{tpu_custom_call.1} parent=1 // pred_fallthru
      _
    // Predicated region
    $region30: #{tpu_custom_call.1} parent=1 // pred_check
      _
    $region31: #{tpu_custom_call.1} parent=1 // pred_check_branch
      %186 = sbr.rel (0) target = $region33
    $region32: #{tpu_custom_call.1} parent=1 // pred_region
      %188 = dma.done [#allocation6], 32
    $region33: #{tpu_custom_call.1} parent=1 // pred_fallthru
      _
    %189 = vsyncpa [#allocation5], 1
    %190 = vsyncpa [#allocation6], 1
    %191 = vsyncpa [#allocation7], 1

</llo_original>
